<compile_context>
chip_gen: v7x
topology: tpu7x:2x2x1
jax: 0.10.0
libtpu: 0.0.40
codegen_flags: <defaults>
</compile_context>

<pallas_src>
import functools

import jax
import jax.numpy as jnp
from jax import lax
from jax.experimental import pallas as pl
from jax.experimental.pallas import tpu as pltpu


def _cat_proto_diff_kernel(dist_ref, row_gid_ref, col_gid_ref, x_ref, o_ref, *,
                           chunk_rows, mxu_dtype):
    """One grid step: per-set positive-part sums for BLK_B prototype sets.

    x_ref       : (1, BLK_B*M, Cp)   stacked prototype rows (native dtype)
    row_gid_ref : (BLK_B*M, 1) i32   set id of each stacked row
    col_gid_ref : (1, BLK_B*M) i32   same ids, lane oriented
    o_ref       : (1, 8, 128) f32    per-set sums in row 0, lane = set index
    """
    total_rows = x_ref.shape[1]
    n_chunks = total_rows // chunk_rows          # static; small unroll
    dist = dist_ref[0, 0]
    lane = lax.broadcasted_iota(jnp.int32, (1, 128), 1)

    acc = jnp.zeros((1, 128), jnp.float32)
    for c in range(n_chunks):
        lo = c * chunk_rows
        hi = lo + chunk_rows
        xc = x_ref[0, lo:hi, :]                  # (cr, Cp)
        rg = row_gid_ref[lo:hi, :]               # (cr, 1) int32
        cg = col_gid_ref[:, lo:hi]               # (1, cr) int32

        xm = xc if mxu_dtype is None else xc.astype(mxu_dtype)
        # Stacked Gram on the MXU: contract Cp on BOTH operands (x @ x.T with
        # no transpose materialized), f32 accumulation.
        g = lax.dot_general(xm, xm,
                            dimension_numbers=(((1,), (1,)), ((), ())),
                            preferred_element_type=jnp.float32)    # (cr, cr)

        # Keep only same-set (block-diagonal) entries of relu(G - dist).
        pos = jnp.where(rg == cg, jnp.maximum(g - dist, 0.0), 0.0)
        row_sums = jnp.sum(pos, axis=1, keepdims=True)             # (cr, 1)

        # Diagonal correction without an eye / full-tile iota:
        #   sum(relu(G - I - d)) = sum(relu(G - d)) - sum(relu(diag - d))
        #                          + sum(relu(diag - 1 - d)),  diag = ||x_r||^2
        xf = xc.astype(jnp.float32)
        diag = jnp.sum(xf * xf, axis=1, keepdims=True)             # (cr, 1)
        row_adj = (row_sums
                   - jnp.maximum(diag - dist, 0.0)
                   + jnp.maximum(diag - (1.0 + dist), 0.0))        # (cr, 1)

        # Scatter the per-row sums into this chunk's set lanes and accumulate.
        acc = acc + jnp.sum(jnp.where(rg == lane, row_adj, 0.0),
                            axis=0, keepdims=True)                 # (1, 128)

    # Lane-dense (8, 128) output tile: per-set sums in row 0, zeros elsewhere.
    row8 = lax.broadcasted_iota(jnp.int32, (o_ref.shape[1], 1), 0)
    o_ref[0] = jnp.where(row8 == 0, acc, 0.0)


def _choose_blocking(b, m, cp, itemsize):
    """Pick (sets_per_chunk S, sets_per_step BLK_B) under lane/MXU/VMEM limits."""
    # Sets stacked per MXU pass: keep the stacked row count <= 256 (MXU dim).
    s = max(1, min(256 // max(m, 1), 128))
    # Sets per grid step: <= 128 (one output lane row), a multiple of S, big
    # enough that the per-step input DMA is ~512 KiB when the batch allows it.
    bytes_per_set = m * cp * itemsize
    want = max(1, -(-(512 * 1024) // bytes_per_set))
    blk = min(128, max(1, min(want, b)))
    s = min(s, blk)
    blk = max(s, (blk // s) * s)

    def est(blk_, s_):
        cr = s_ * m
        return (2 * blk_ * m * cp * itemsize      # double-buffered input block
                + 4 * blk_ * m * 4                # set-id vectors (buffered)
                + 2 * cr * cr * 4                 # Gram + masked temp
                + cr * 128 * 4                    # lane-scatter temp
                + 2 * 8 * 128 * 4                 # output tile
                + (64 << 10))                     # slack

    budget = 12 * 1024 * 1024   # fits default scoped VMEM on v5e/v6e/v7x
    while blk > s and est(blk, s) > budget:
        blk -= s
    while s > 1 and est(blk, s) > budget:
        s = max(1, s // 2)
        blk = s
    if est(blk, s) > budget:
        # TODO(synk): add a Cp-tiled ("arbitrary" trailing grid axis)
        # accumulator variant for prototype matrices whose single-set slab
        # exceeds the scoped VMEM limit.
        raise ValueError(
            f"CatProtoDiff prototypes ({m} x {cp} @ {itemsize}B) are too large "
            "for the single-pass VMEM tiling of this kernel.")
    return s, blk


def cat_proto_diff_batched(prototypes: jax.Array, dist=0.1, mxu_dtype=None) -> jax.Array:
    """Per-set CatProtoDiff losses for a batch of prototype matrices.

    prototypes: [B, M, C]; returns f32 [B].
    mxu_dtype: optional narrower MXU feed dtype (e.g. jnp.bfloat16); the
      accumulation stays f32, but D entries near 0 can flip across the relu
      threshold vs. a full-f32 reference, so loosen tolerances accordingly.
    """
    b, m, c = prototypes.shape
    itemsize = jnp.dtype(prototypes.dtype).itemsize

    # Pad the feature (lane) axis to a multiple of 128; zero columns leave the
    # Gram matrix and the row norms unchanged.
    cp = -(-c // 128) * 128
    if cp != c:
        prototypes = jnp.pad(prototypes, ((0, 0), (0, 0), (0, cp - c)))

    s, blk = _choose_blocking(b, m, cp, itemsize)

    # Pad the batch to a multiple of BLK_B with zero sets (their lanes are
    # discarded below) and pre-flatten (set, row) -> stacked rows so the kernel
    # never reshapes.
    b_pad = -(-b // blk) * blk
    if b_pad != b:
        prototypes = jnp.pad(prototypes, ((0, b_pad - b), (0, 0), (0, 0)))
    num_steps = b_pad // blk
    x = prototypes.reshape(num_steps, blk * m, cp)

    # Set id of every stacked row within a step (row- and lane-oriented); tiny
    # int32 arrays, computed outside the kernel (no in-kernel integer div).
    gid = jnp.arange(blk * m, dtype=jnp.int32) // m
    row_gid = gid.reshape(blk * m, 1)
    col_gid = gid.reshape(1, blk * m)

    dist_arr = jnp.asarray(dist, dtype=jnp.float32).reshape(1, 1)

    kernel = functools.partial(_cat_proto_diff_kernel,
                               chunk_rows=s * m, mxu_dtype=mxu_dtype)

    out = pl.pallas_call(
        kernel,
        out_shape=jax.ShapeDtypeStruct((num_steps, 8, 128), jnp.float32),
        grid=(num_steps,),
        in_specs=[
            pl.BlockSpec(memory_space=pltpu.MemorySpace.SMEM),     # dist scalar
            pl.BlockSpec((blk * m, 1), lambda i: (0, 0)),          # row set ids
            pl.BlockSpec((1, blk * m), lambda i: (0, 0)),          # col set ids
            pl.BlockSpec((1, blk * m, cp), lambda i: (i, 0, 0)),   # stacked protos
        ],
        out_specs=pl.BlockSpec((1, 8, 128), lambda i: (i, 0, 0)),
        compiler_params=pltpu.CompilerParams(
            dimension_semantics=("parallel",),
        ),
    )(dist_arr, row_gid, col_gid, x)

    # Per-step sums live in row 0, lanes [0:blk]; padded sets fall off the end.
    return out[:, 0, :blk].reshape(num_steps * blk)[:b]


def _reference(x, dist):
    xf = x.astype(jnp.float32)
    g = xf @ xf.T
    d = g - jnp.eye(x.shape[0], dtype=jnp.float32) - jnp.float32(dist)
    return jnp.sum(jnp.where(d > 0, d, 0.0))


def cat_proto_diff(cat_prototype: jax.Array, dist=0.1, use_pallas=True) -> jax.Array:
    """Pallas implementation of CatProtoDiff.forward; returns a scalar f32.

    For a single tiny prototype matrix the kernel-launch + DMA overhead
    dominates, so `use_pallas=False` gives a pure-jnp path that XLA can fuse
    into surrounding ops; the Pallas path shines via the batched entry point.
    """
    if not use_pallas:
        return _reference(cat_prototype, dist)
    return cat_proto_diff_batched(cat_prototype[None], dist)[0]


if __name__ == "__main__":
    key = jax.random.PRNGKey(0)
    k1, k2 = jax.random.split(key)
    M, C = 8, 32            # 8 category prototypes, 32-dim features
    DIST = 0.1

    # Single prototype matrix (module semantics).
    cat_prototype = jax.random.normal(k1, (M, C), dtype=jnp.float32)
    loss = cat_proto_diff(cat_prototype, dist=DIST)
    jax.block_until_ready(loss)
    ref = _reference(cat_prototype, DIST)
    assert jnp.allclose(loss, ref, rtol=1e-4, atol=1e-4), (loss, ref)

    # Batched call: many prototype sets per grid step / per MXU pass.
    B = 16
    protos = jax.random.normal(k2, (B, M, C), dtype=jnp.float32)
    losses = cat_proto_diff_batched(protos, DIST)
    jax.block_until_ready(losses)
    refs = jnp.stack([_reference(protos[i], DIST) for i in range(B)])
    assert jnp.allclose(losses, refs, rtol=1e-4, atol=1e-4), (losses, refs)

    print("KERNEL_OK")
</pallas_src>

<mosaic_0001>
module attributes {stable_mosaic.version = 11 : i64} {
  func.func @_cat_proto_diff_kernel(%arg0: i32, %arg1: memref<1x1xf32, #tpu.memory_space<smem>>, %arg2: memref<8x1xi32, #tpu.memory_space<vmem>>, %arg3: memref<1x8xi32, #tpu.memory_space<vmem>>, %arg4: memref<1x8x128xf32, #tpu.memory_space<vmem>>, %arg5: memref<1x8x128xf32, #tpu.memory_space<vmem>>) attributes {dimension_semantics = [#tpu.dimension_semantics<parallel>], iteration_bounds = array<i64: 1>, scalar_prefetch = 0 : i64, scratch_operands = 0 : i64, tpu.core_type = #tpu.core_type<tc>, window_params = [{transform_indices = @transform_0, window_bounds = array<i64: 1, 1>}, {pipeline_mode = #tpu.pipeline_mode<synchronous>, transform_indices = @transform_1, window_bounds = array<i64: 8, 1>}, {pipeline_mode = #tpu.pipeline_mode<synchronous>, transform_indices = @transform_2, window_bounds = array<i64: 1, 8>}, {transform_indices = @transform_3, window_bounds = array<i64: 1, 8, 128>}, {transform_indices = @transform_4, window_bounds = array<i64: 1, 8, 128>}]} {
    %c0 = arith.constant 0 : index
    %c0_0 = arith.constant 0 : index
    %0 = memref.load %arg1[%c0, %c0_0] : memref<1x1xf32, #tpu.memory_space<smem>>
    %1 = tpu.iota {dimensions = array<i32: 1>} : vector<1x128xi32>
    %cst = arith.constant 0.000000e+00 : f32
    %2 = vector.broadcast %cst : f32 to vector<1x128xf32>
    %c0_1 = arith.constant 0 : index
    %c0_2 = arith.constant 0 : index
    %c0_3 = arith.constant 0 : index
    %3 = vector.load %arg4[%c0_1, %c0_2, %c0_3] : memref<1x8x128xf32, #tpu.memory_space<vmem>>, vector<1x8x128xf32>
    %4 = vector.shape_cast %3 : vector<1x8x128xf32> to vector<8x128xf32>
    %c0_4 = arith.constant 0 : index
    %c0_5 = arith.constant 0 : index
    %5 = vector.load %arg2[%c0_4, %c0_5] : memref<8x1xi32, #tpu.memory_space<vmem>>, vector<8x1xi32>
    %c0_6 = arith.constant 0 : index
    %c0_7 = arith.constant 0 : index
    %6 = vector.load %arg3[%c0_6, %c0_7] : memref<1x8xi32, #tpu.memory_space<vmem>>, vector<1x8xi32>
    %cst_8 = arith.constant dense<0.000000e+00> : vector<8x8xf32>
    %7 = tpu.matmul %4, %4, %cst_8 {dimension_numbers = #tpu.dot_dimension_numbers<[1], [1], [0], [0], [0, 0, 1, 0], [], []>} : vector<8x128xf32>, vector<8x128xf32>, vector<8x8xf32> -> vector<8x8xf32>
    %8 = vector.broadcast %5 : vector<8x1xi32> to vector<8x8xi32>
    %9 = vector.broadcast %6 : vector<1x8xi32> to vector<8x8xi32>
    %10 = arith.cmpi eq, %8, %9 : vector<8x8xi32>
    %11 = vector.broadcast %0 : f32 to vector<8x8xf32>
    %12 = arith.subf %7, %11 : vector<8x8xf32>
    %cst_9 = arith.constant 0.000000e+00 : f32
    %13 = vector.broadcast %cst_9 : f32 to vector<8x8xf32>
    %14 = arith.maximumf %12, %13 : vector<8x8xf32>
    %cst_10 = arith.constant 0.000000e+00 : f32
    %15 = vector.broadcast %cst_10 : f32 to vector<8x8xf32>
    %16 = arith.select %10, %14, %15 : vector<8x8xi1>, vector<8x8xf32>
    %cst_11 = arith.constant dense<0.000000e+00> : vector<8xf32>
    %17 = vector.multi_reduction <add>, %16, %cst_11 [1] : vector<8x8xf32> to vector<8xf32>
    %18 = vector.shape_cast %17 : vector<8xf32> to vector<8x1xf32>
    %19 = arith.mulf %4, %4 : vector<8x128xf32>
    %cst_12 = arith.constant dense<0.000000e+00> : vector<8xf32>
    %20 = vector.multi_reduction <add>, %19, %cst_12 [1] : vector<8x128xf32> to vector<8xf32>
    %21 = vector.shape_cast %20 : vector<8xf32> to vector<8x1xf32>
    %22 = vector.broadcast %0 : f32 to vector<8x1xf32>
    %23 = arith.subf %21, %22 : vector<8x1xf32>
    %cst_13 = arith.constant 0.000000e+00 : f32
    %24 = vector.broadcast %cst_13 : f32 to vector<8x1xf32>
    %25 = arith.maximumf %23, %24 : vector<8x1xf32>
    %26 = arith.subf %18, %25 : vector<8x1xf32>
    %cst_14 = arith.constant 1.000000e+00 : f32
    %27 = arith.addf %cst_14, %0 : f32
    %28 = vector.broadcast %27 : f32 to vector<8x1xf32>
    %29 = arith.subf %21, %28 : vector<8x1xf32>
    %cst_15 = arith.constant 0.000000e+00 : f32
    %30 = vector.broadcast %cst_15 : f32 to vector<8x1xf32>
    %31 = arith.maximumf %29, %30 : vector<8x1xf32>
    %32 = arith.addf %26, %31 : vector<8x1xf32>
    %33 = vector.broadcast %5 : vector<8x1xi32> to vector<8x128xi32>
    %34 = vector.broadcast %1 : vector<1x128xi32> to vector<8x128xi32>
    %35 = arith.cmpi eq, %33, %34 : vector<8x128xi32>
    %cst_16 = arith.constant 0.000000e+00 : f32
    %36 = vector.shape_cast %32 : vector<8x1xf32> to vector<8x1xf32>
    %37 = vector.broadcast %36 : vector<8x1xf32> to vector<8x128xf32>
    %38 = vector.broadcast %cst_16 : f32 to vector<8x128xf32>
    %39 = arith.select %35, %37, %38 : vector<8x128xi1>, vector<8x128xf32>
    %cst_17 = arith.constant dense<0.000000e+00> : vector<128xf32>
    %40 = vector.multi_reduction <add>, %39, %cst_17 [0] : vector<8x128xf32> to vector<128xf32>
    %41 = vector.shape_cast %40 : vector<128xf32> to vector<1x128xf32>
    %42 = arith.addf %2, %41 : vector<1x128xf32>
    %43 = tpu.iota {dimensions = array<i32: 0>} : vector<8x1xi32>
    %c0_i32 = arith.constant 0 : i32
    %44 = vector.broadcast %c0_i32 : i32 to vector<8x1xi32>
    %45 = arith.cmpi eq, %43, %44 : vector<8x1xi32>
    %cst_18 = arith.constant 0.000000e+00 : f32
    %46 = vector.shape_cast %45 : vector<8x1xi1> to vector<8x1xi1>
    %47 = vector.broadcast %46 : vector<8x1xi1> to vector<8x128xi1>
    %48 = vector.shape_cast %42 : vector<1x128xf32> to vector<1x128xf32>
    %49 = vector.broadcast %48 : vector<1x128xf32> to vector<8x128xf32>
    %50 = vector.broadcast %cst_18 : f32 to vector<8x128xf32>
    %51 = arith.select %47, %49, %50 : vector<8x128xi1>, vector<8x128xf32>
    %c0_19 = arith.constant 0 : index
    %c0_20 = arith.constant 0 : index
    %c0_21 = arith.constant 0 : index
    %52 = vector.load %arg5[%c0_19, %c0_20, %c0_21] : memref<1x8x128xf32, #tpu.memory_space<vmem>>, vector<1x8x128xf32>
    %53 = vector.shape_cast %52 : vector<1x8x128xf32> to vector<8x128xf32>
    %54 = vector.shape_cast %51 : vector<8x128xf32> to vector<1x8x128xf32>
    tpu.vector_store %arg5[%c0_19, %c0_20, %c0_21], %54 {strides = array<i32>} : memref<1x8x128xf32, #tpu.memory_space<vmem>>, vector<1x8x128xf32>,
    return
  }
  func.func @transform_0(%arg0: i32) -> (i32, i32) {
    %c0_i32 = arith.constant 0 : i32
    %c0_i32_0 = arith.constant 0 : i32
    %c0_i32_1 = arith.constant 0 : i32
    return %c0_i32, %c0_i32_0 : i32, i32
  }
  func.func @transform_1(%arg0: i32) -> (i32, i32) {
    %c0_i32 = arith.constant 0 : i32
    %c0_i32_0 = arith.constant 0 : i32
    %c0_i32_1 = arith.constant 0 : i32
    return %c0_i32, %c0_i32_0 : i32, i32
  }
  func.func @transform_2(%arg0: i32) -> (i32, i32) {
    %c0_i32 = arith.constant 0 : i32
    %c0_i32_0 = arith.constant 0 : i32
    %c0_i32_1 = arith.constant 0 : i32
    return %c0_i32, %c0_i32_0 : i32, i32
  }
  func.func @transform_3(%arg0: i32) -> (i32, i32, i32) {
    %c0_i32 = arith.constant 0 : i32
    %c0_i32_0 = arith.constant 0 : i32
    %c0_i32_1 = arith.constant 0 : i32
    return %arg0, %c0_i32, %c0_i32_0 : i32, i32, i32
  }
  func.func @transform_4(%arg0: i32) -> (i32, i32, i32) {
    %c0_i32 = arith.constant 0 : i32
    %c0_i32_0 = arith.constant 0 : i32
    %c0_i32_1 = arith.constant 0 : i32
    return %arg0, %c0_i32, %c0_i32_0 : i32, i32, i32
  }
}

</mosaic_0001>

<llo_original>
// kernel: tpu_custom_call.1
$region0: #{tpu_custom_call.1}
  #allocation0 [shape = 'u32[]', space=smem, size = 0x4, offset = 0x4, fixed_abs, tag = 'smem constant byte address 0x4 - core index']
  #allocation1 [shape = 'u32[144,128]{1,0:T(1,128)}', space=vmem, size = 0x12000, scoped, tag = 'internal scratch']
  #allocation2 [shape = 'f32[1,1]{1,0:T(1,128)S(6)}', space=smem, size = 0x200, scoped, tag = 'scoped memory for tpu_custom_call.1']
  %s0 = inlined_call_operand.<no memory space> [shape: f32[1,1], index: 0, kind: input, shape index: {}]
  %s1 = inlined_call_operand.vmem [shape: s32[8,1], index: 1, kind: input, shape index: {}]
  %s2 = inlined_call_operand.vmem [shape: s32[1,8], index: 2, kind: input, shape index: {}]
  %s3 = inlined_call_operand.vmem [shape: f32[1,8,128], index: 3, kind: input, shape index: {}]
  %s4 = inlined_call_operand.hbm [shape: f32[1,8,128], index: 4, kind: output, shape index: {}]
  %s5 = sld [smem:[#allocation0]]
  $region26: #{tpu_custom_call.1} parent=0
    _
  %s7 = ssub.s32 1, %s5
  %s8 = scalar_select 0, %s7, %s5
  %9 = sst [smem:[#allocation2]] %s0
  $region1: #{tpu_custom_call.1} parent=0
    #allocation3 [shape = 'u8[4096]{0}', space=vmem, size = 0x1000, scoped, tag = 'output window, operand 0, single buffered']
    #allocation4 [shape = 's32[1]{0}', space=sflag, size = 0x4, scoped, tag = 'scoped memory for tpu_custom_call.1']
    %10 = vsyncpa [#allocation4], 0
    // Predicated region
    $region2: #{tpu_custom_call.1} parent=1 // pred_check
      _
    $region3: #{tpu_custom_call.1} parent=1 // pred_check_branch
      %12 = sbr.rel (0) target = $region5
    $region4: #{tpu_custom_call.1} parent=1 // pred_region
      _
    $region5: #{tpu_custom_call.1} parent=1 // pred_fallthru
      _
    // Predicated region
    $region6: #{tpu_custom_call.1} parent=1 // pred_check
      _
    $region7: #{tpu_custom_call.1} parent=1 // pred_check_branch
      %14 = sbr.rel (0) target = $region9
    $region8: #{tpu_custom_call.1} parent=1 // pred_region
      _
    $region9: #{tpu_custom_call.1} parent=1 // pred_fallthru
      _
    // Predicated region
    $region10: #{tpu_custom_call.1} parent=1 // pred_check
      _
    $region11: #{tpu_custom_call.1} parent=1 // pred_check_branch
      %16 = sbr.rel (0) target = $region13
    $region12: #{tpu_custom_call.1} parent=1 // pred_region
      _
    $region13: #{tpu_custom_call.1} parent=1 // pred_fallthru
      _
    // Predicated region
    $region14: #{tpu_custom_call.1} parent=1 // pred_check
      _
    $region15: #{tpu_custom_call.1} parent=1 // pred_check_branch
      %18 = sbr.rel (0) target = $region17
    $region16: #{tpu_custom_call.1} parent=1 // pred_region
      _
    $region17: #{tpu_custom_call.1} parent=1 // pred_fallthru
      _
    %s19 = sld [smem:[#allocation2]]
    %v20 = vlaneseq
    %v21 = vand.u32 %v20, 127
    %v22 = vld [vmem:[%s3] sm:$0xff]
    %v23 = vld [vmem:[%s1] sm:$0xff]
    %v24 = vld [vmem:[%s2] sm:$0x1]
    %25 = vmatprep.subr.mxu0 0.0
    %26 = vmatpush1.xpose.msra.mxu0 %v22
    %27 = vmatprep.subr.mxu0 0.0
    %28 = vmatpush1.xpose.msra.mxu0 0.0
    %29 = vmatprep.subr.mxu0 0.0
    %30 = vmatpush1.xpose.msra.mxu0 0.0
    %31 = vmatprep.subr.mxu0 0.0
    %32 = vmatpush1.xpose.msra.mxu0 0.0
    %33 = vmatprep.subr.mxu0 0.0
    %34 = vmatpush1.xpose.msra.mxu0 0.0
    %35 = vmatprep.subr.mxu0 0.0
    %36 = vmatpush1.xpose.msra.mxu0 0.0
    %37 = vmatprep.subr.mxu0 0.0
    %38 = vmatpush1.xpose.msra.mxu0 0.0
    %39 = vmatprep.subr.mxu0 0.0
    %40 = vmatpush1.xpose.msra.mxu0 0.0
    %41 = vmatprep.subr.mxu0 0.0
    %42 = vmatpush1.xpose.msra.mxu0 0.0
    %43 = vmatprep.subr.mxu0 0.0
    %44 = vmatpush1.xpose.msra.mxu0 0.0
    %45 = vmatprep.subr.mxu0 0.0
    %46 = vmatpush1.xpose.msra.mxu0 0.0
    %47 = vmatprep.subr.mxu0 0.0
    %48 = vmatpush1.xpose.msra.mxu0 0.0
    %49 = vmatprep.subr.mxu0 0.0
    %50 = vmatpush1.xpose.msra.mxu0 0.0
    %51 = vmatprep.subr.mxu0 0.0
    %52 = vmatpush1.xpose.msra.mxu0 0.0
    %53 = vmatprep.subr.mxu0 0.0
    %54 = vmatpush1.xpose.msra.mxu0 0.0
    %55 = vmatprep.subr.mxu0 0.0
    %56 = vmatpush1.xpose.msra.mxu0 0.0
    %57 = vmatprep.subr.mxu0 0.0
    %58 = vmatpush1.xpose.msra.mxu0 0.0
    %59 = vmatprep.subr.mxu0 0.0
    %60 = vmatpush1.xpose.msra.mxu0 0.0
    %61 = vmatprep.subr.mxu0 0.0
    %62 = vmatpush1.xpose.msra.mxu0 0.0
    %63 = vmatprep.subr.mxu0 0.0
    %64 = vmatpush1.xpose.msra.mxu0 0.0
    %65 = vmatprep.subr.mxu0 0.0
    %66 = vmatpush1.xpose.msra.mxu0 0.0
    %67 = vmatprep.subr.mxu0 0.0
    %68 = vmatpush1.xpose.msra.mxu0 0.0
    %69 = vmatprep.subr.mxu0 0.0
    %70 = vmatpush1.xpose.msra.mxu0 0.0
    %71 = vmatprep.subr.mxu0 0.0
    %72 = vmatpush1.xpose.msra.mxu0 0.0
    %73 = vmatprep.subr.mxu0 0.0
    %74 = vmatpush1.xpose.msra.mxu0 0.0
    %75 = vmatprep.subr.mxu0 0.0
    %76 = vmatpush1.xpose.msra.mxu0 0.0
    %77 = vmatprep.subr.mxu0 0.0
    %78 = vmatpush1.xpose.msra.mxu0 0.0
    %79 = vmatprep.subr.mxu0 0.0
    %80 = vmatpush1.xpose.msra.mxu0 0.0
    %81 = vmatprep.subr.mxu0 0.0
    %82 = vmatpush1.xpose.msra.mxu0 0.0
    %83 = vmatprep.subr.mxu0 0.0
    %84 = vmatpush1.xpose.msra.mxu0 0.0
    %85 = vmatprep.subr.mxu0 0.0
    %86 = vmatpush1.xpose.msra.mxu0 0.0
    %87 = vmatprep.subr.mxu0 0.0
    %88 = vmatpush1.xpose.msra.mxu0 0.0
    %89 = vmatprep.mubr.f32.mxu0 0.0
    %90 = vmatmul.mubr.f32.gmra.mrb[0].mxu0 %v22
    %v91 = vpop.f32.mrb[0].mxu0
    %v92 = vadd.f32 0.0, %v91
    %v93 = vpop.f32.mrb[0].mxu0
    %94 = vdwg.mxu0
    %95 = vset.pattern.permute.xlu0 0
    %96 = vperm.xlu0 %95, %v23
    %v97 = vpop.permute.xlu0 %96
    %v98 = vlaneseq
    %v99 = vshrl.u32 %v98, 7
    %v100 = vsub.s32 0, %v99
    %v101 = vrot.slane %v24, %v100
    %vm102 = vcmp.eq.s32.totalorder %v97, %v101
    %v103 = vstv %s19
    %v104 = vsub.f32 %v92, %v103
    %v105 = vmax.f32 %v104, 0.0
    %v106 = vsel %vm102, %v105, 0.0
    %vm107 = vcmask 64512
    %v108 = vsel %vm107, %v106, 0.0
    %109 = vadd.xlane.f32.xlu0 %v108
    %v110 = vpop.xlane.xlu0 %109
    %v111 = vmul.f32 %v22, %v22
    %112 = vadd.xlane.f32.xlu0 %v111
    %v113 = vpop.xlane.xlu0 %112
    %v114 = vsub.f32 %v113, %v103
    %v115 = vmax.f32 %v114, 0.0
    %v116 = vsub.f32 %v110, %v115
    %s117 = sadd.f32 %s19, 1.0
    %v118 = vstv %s117
    %v119 = vsub.f32 %v113, %v118
    %v120 = vmax.f32 %v119, 0.0
    %v121 = vadd.f32 %v116, %v120
    %vm122 = vcmp.eq.s32.totalorder %v97, %v21
    %v123 = vsel %vm122, %v121, 0.0
    %v124 = vrot.slane %v123, 4
    %v125 = vadd.f32 %v123, %v124
    %v126 = vrot.slane %v125, 2
    %v127 = vadd.f32 %v125, %v126
    %v128 = vrot.slane %v127, 1
    %v129 = vadd.f32 %v127, %v128
    %v130 = vadd.f32 %v129, 0.0
    %v131 = vlaneseq
    %v132 = vshrl.u32 %v131, 7
    %vm133 = vcmp.eq.s32.totalorder %v132, 0
    %v134 = vsel %vm133, 1, 0
    %vm135 = vcmp.eq.s32.totalorder %v134, 1
    %v136 = vsel %vm135, %v130, 0.0
    %137 = vst [vmem:[#allocation3] sm:$0xff] %v136
    // Predicated region
    $region18: #{tpu_custom_call.1} parent=1 // pred_check
      _
    $region19: #{tpu_custom_call.1} parent=1 // pred_check_branch
      %139 = sbr.rel (0) target = $region21
    $region20: #{tpu_custom_call.1} parent=1 // pred_region
      %s141 = ssub.s32 128, 128
      %142 = vsyncadd [#allocation4], %s141
      %s144 = sshll.u32 [#allocation3], 4
      %s145 = int_to_ptr.vmem [resolvable:$true] %s144
      %147 = dma.vmem_to_hbm [thread:$0]  %s145, 128, %s4, [#allocation4]
    $region21: #{tpu_custom_call.1} parent=1 // pred_fallthru
      _
    // Predicated region
    $region22: #{tpu_custom_call.1} parent=1 // pred_check
      _
    $region23: #{tpu_custom_call.1} parent=1 // pred_check_branch
      %149 = sbr.rel (0) target = $region25
    $region24: #{tpu_custom_call.1} parent=1 // pred_region
      %150 = dma.done [#allocation4], 128
    $region25: #{tpu_custom_call.1} parent=1 // pred_fallthru
      _
    %151 = vsyncpa [#allocation4], 1

</llo_original>
